<compile_context>
chip_gen: v6e
topology: v6e:2x2x1
jax: 0.10.0
libtpu: 0.0.40
codegen_flags: <defaults>
</compile_context>

<pallas_src>
import jax
import jax.numpy as jnp
from jax.experimental import pallas as pl
from jax.experimental.pallas import tpu as pltpu

KSIZE = 24   # Conv1d kernel size
OCH = 20     # Conv1d out channels
POOL = 5     # MaxPool1d window / stride
BN_EPS = 1e-5


def _cnn1d_kernel(s_ref, wtoep_ref, bconv_ref, w1_ref, b1_ref, w2_ref, b2_ref,
                  out_ref):
    """Whole CNN1D forward for one batch block of center-pixel spectra.

    s_ref:     (BM, C)         center-pixel spectra
    wtoep_ref: (POOL, C, F)    Toeplitz-expanded Conv1d weights, one per pool offset
    bconv_ref: (1, F)          conv bias tiled to the flattened (p, o) feature order
    w1_ref:    (F, HID)        fc1 weight (in, out) with BN folded in, rows in (p, o) order
    b1_ref:    (1, HID)        fc1 bias with BN folded in
    w2_ref:    (HID, NC)       fc2 weight (in, out)
    b2_ref:    (1, NC)
    out_ref:   (BM, NC)
    """
    s = s_ref[...]                                                         # (BM, C)

    # Conv1d(1,20,24) + MaxPool1d(5): POOL full-width matmuls + running max,
    # everything stays in vregs (no feature scratch / masked stores).
    pooled = jnp.dot(s, wtoep_ref[0], preferred_element_type=jnp.float32)
    for j in range(1, POOL):
        cj = jnp.dot(s, wtoep_ref[j], preferred_element_type=jnp.float32)
        pooled = jnp.maximum(pooled, cj)

    # Bias + ReLU hoisted out of the pool max (both monotone -> commute with max).
    feat = jnp.maximum(pooled + bconv_ref[...], 0.0)                       # (BM, F)

    # fc1 (BatchNorm folded into w1/b1) + ReLU.
    h = jnp.dot(feat, w1_ref[...], preferred_element_type=jnp.float32) + b1_ref[...]
    h = jnp.maximum(h, 0.0)

    # fc2
    out_ref[...] = jnp.dot(h, w2_ref[...], preferred_element_type=jnp.float32) + b2_ref[...]


def cnn1d_forward(x, params):
    """x: (B, C, H, W) NCHW float32. Returns (B, num_classes) logits."""
    B, C, H, W = x.shape
    NC = params["w2"].shape[0]
    HID = params["w1"].shape[0]
    T = C - (KSIZE - 1)
    P = T // POOL
    F = P * OCH
    assert F == params["w1"].shape[1], "fc1 input size mismatch with num_channels"

    # ---- wrapper glue: layout prep only, no hot-path math ----
    s = x[:, :, H // 2, W // 2].astype(jnp.float32)                        # (B, C)

    # Toeplitz-expanded conv weights:
    #   wtoep[j, c, p*OCH + o] = wconv[o, c - (p*POOL + j)]  (zero outside kernel)
    Wc = params["wconv"][:, 0, :].astype(jnp.float32)                      # (O, K)
    wtoep = jnp.zeros((POOL, C, F), jnp.float32)
    for j in range(POOL):
        for p in range(P):
            t = p * POOL + j
            wtoep = wtoep.at[j, t:t + KSIZE, p * OCH:(p + 1) * OCH].set(Wc.T)
    # Conv bias tiled into flattened (p, o) feature order.
    bconv_t = jnp.tile(params["bconv"].astype(jnp.float32), P)[None, :]    # (1, F)

    # fc1 rows permuted from PyTorch flatten order (o*P + p) to kernel order
    # (p*OCH + o), then eval-mode BatchNorm folded in.
    w1_t = params["w1"].T.astype(jnp.float32)                              # (F, HID), row = o*P+p
    w1_t = w1_t.reshape(OCH, P, HID).transpose(1, 0, 2).reshape(F, HID)    # row = p*OCH+o
    scale = params["bn_gamma"] * jax.lax.rsqrt(params["bn_rvar"] + BN_EPS)
    w1_f = w1_t * scale[None, :]
    b1_f = ((params["b1"] - params["bn_rmean"]) * scale + params["bn_beta"])[None, :]

    w2_t = params["w2"].T.astype(jnp.float32)                              # (HID, NC)
    b2 = params["b2"].astype(jnp.float32)[None, :]                         # (1, NC)

    # Batch grid: block kept small enough for v7x's 64 MiB VMEM; parallel axis
    # lets v7x's 2 TensorCores split the batch. Pad batch to a block multiple.
    Bp = ((B + 7) // 8) * 8
    BM = min(Bp, 256)
    Bp = ((Bp + BM - 1) // BM) * BM
    if Bp != B:
        s = jnp.pad(s, ((0, Bp - B), (0, 0)))
    grid = (Bp // BM,)

    def full_spec(*shape):
        return pl.BlockSpec(shape, lambda i, _n=len(shape): (0,) * _n)

    out = pl.pallas_call(
        _cnn1d_kernel,
        out_shape=jax.ShapeDtypeStruct((Bp, NC), jnp.float32),
        grid=grid,
        in_specs=[
            pl.BlockSpec((BM, C), lambda i: (i, 0)),   # spectra: batch-blocked
            full_spec(POOL, C, F),                     # Toeplitz conv weights
            full_spec(1, F),                           # conv bias (tiled)
            full_spec(F, HID),                         # fc1 (BN-folded)
            full_spec(1, HID),
            full_spec(HID, NC),                        # fc2
            full_spec(1, NC),
        ],
        out_specs=pl.BlockSpec((BM, NC), lambda i: (i, 0)),
        compiler_params=pltpu.CompilerParams(dimension_semantics=("parallel",)),
    )(s, wtoep, bconv_t, w1_f, b1_f, w2_t, b2)
    return out[:B]


def cnn1d_reference(x, params):
    """Pure-JAX reference mirroring the PyTorch forward (eval-mode BatchNorm)."""
    B, C, H, W = x.shape
    T = C - (KSIZE - 1)
    P = T // POOL
    s = x[:, :, H // 2, W // 2].astype(jnp.float32)                        # (B, C)
    Wc = params["wconv"][:, 0, :]                                          # (O, K)
    patches = jnp.stack([s[:, t:t + KSIZE] for t in range(T)], axis=1)     # (B, T, K)
    conv = jnp.einsum("btk,ok->bot", patches, Wc) + params["bconv"][None, :, None]
    conv = jnp.maximum(conv, 0.0)
    pooled = conv[:, :, :P * POOL].reshape(B, OCH, P, POOL).max(axis=3)    # (B, O, P)
    flat = pooled.reshape(B, OCH * P)                                      # PyTorch flatten order
    h = flat @ params["w1"].T + params["b1"]
    h = (h - params["bn_rmean"]) / jnp.sqrt(params["bn_rvar"] + BN_EPS)
    h = h * params["bn_gamma"] + params["bn_beta"]
    h = jnp.maximum(h, 0.0)
    return h @ params["w2"].T + params["b2"]


def init_params(key, num_channels, num_classes):
    T = num_channels - (KSIZE - 1)
    P = T // POOL
    hidden_in = P * OCH  # == (num_channels - 23) // 5 * 20, the module's input_shape
    ks = jax.random.split(key, 8)

    def u(k, shape, fan_in):
        bound = 1.0 / jnp.sqrt(float(fan_in))
        return jax.random.uniform(k, shape, jnp.float32, -bound, bound)

    return {
        "wconv": u(ks[0], (OCH, 1, KSIZE), KSIZE),          # Conv1d weight (O, 1, K)
        "bconv": u(ks[1], (OCH,), KSIZE),
        "w1": u(ks[2], (100, hidden_in), hidden_in),        # Linear(hidden_in, 100)
        "b1": u(ks[3], (100,), hidden_in),
        "bn_gamma": jnp.ones((100,), jnp.float32),
        "bn_beta": jnp.zeros((100,), jnp.float32),
        "bn_rmean": 0.1 * jax.random.normal(ks[4], (100,), jnp.float32),
        "bn_rvar": 1.0 + 0.1 * jax.random.uniform(ks[5], (100,), jnp.float32),
        "w2": u(ks[6], (num_classes, 100), 100),            # Linear(100, num_classes)
        "b2": u(ks[7], (num_classes,), 100),
    }


if __name__ == "__main__":
    B, NUM_CHANNELS, NUM_CLASSES, H, W = 8, 48, 10, 8, 8   # 48 bands -> flat dim 100
    key = jax.random.PRNGKey(0)
    kx, kp = jax.random.split(key)
    x = jax.random.normal(kx, (B, NUM_CHANNELS, H, W), dtype=jnp.float32)
    params = init_params(kp, NUM_CHANNELS, NUM_CLASSES)

    out = jax.block_until_ready(cnn1d_forward(x, params))
    ref = jax.block_until_ready(cnn1d_reference(x, params))

    assert out.shape == (B, NUM_CLASSES), out.shape
    if not bool(jnp.allclose(out, ref, atol=1e-4, rtol=1e-4)):
        raise AssertionError("Pallas kernel output does not match JAX reference")
    print("KERNEL_OK")
</pallas_src>

<mosaic_0001>
module attributes {stable_mosaic.version = 11 : i64} {
  func.func @_cnn1d_kernel(%arg0: i32, %arg1: memref<8x48xf32, #tpu.memory_space<vmem>>, %arg2: memref<5x48x100xf32, #tpu.memory_space<vmem>>, %arg3: memref<1x100xf32, #tpu.memory_space<vmem>>, %arg4: memref<100x100xf32, #tpu.memory_space<vmem>>, %arg5: memref<1x100xf32, #tpu.memory_space<vmem>>, %arg6: memref<100x10xf32, #tpu.memory_space<vmem>>, %arg7: memref<1x10xf32, #tpu.memory_space<vmem>>, %arg8: memref<8x10xf32, #tpu.memory_space<vmem>>) attributes {dimension_semantics = [#tpu.dimension_semantics<parallel>], iteration_bounds = array<i64: 1>, scalar_prefetch = 0 : i64, scratch_operands = 0 : i64, tpu.core_type = #tpu.core_type<tc>, window_params = [{transform_indices = @transform_0, window_bounds = array<i64: 8, 48>}, {pipeline_mode = #tpu.pipeline_mode<synchronous>, transform_indices = @transform_1, window_bounds = array<i64: 5, 48, 100>}, {pipeline_mode = #tpu.pipeline_mode<synchronous>, transform_indices = @transform_2, window_bounds = array<i64: 1, 100>}, {pipeline_mode = #tpu.pipeline_mode<synchronous>, transform_indices = @transform_3, window_bounds = array<i64: 100, 100>}, {pipeline_mode = #tpu.pipeline_mode<synchronous>, transform_indices = @transform_4, window_bounds = array<i64: 1, 100>}, {pipeline_mode = #tpu.pipeline_mode<synchronous>, transform_indices = @transform_5, window_bounds = array<i64: 100, 10>}, {pipeline_mode = #tpu.pipeline_mode<synchronous>, transform_indices = @transform_6, window_bounds = array<i64: 1, 10>}, {transform_indices = @transform_7, window_bounds = array<i64: 8, 10>}]} {
    %c0 = arith.constant 0 : index
    %c0_0 = arith.constant 0 : index
    %0 = vector.load %arg1[%c0, %c0_0] : memref<8x48xf32, #tpu.memory_space<vmem>>, vector<8x48xf32>
    %c0_1 = arith.constant 0 : index
    %c0_2 = arith.constant 0 : index
    %c0_3 = arith.constant 0 : index
    %1 = vector.load %arg2[%c0_1, %c0_2, %c0_3] : memref<5x48x100xf32, #tpu.memory_space<vmem>>, vector<1x48x100xf32>
    %2 = vector.shape_cast %1 : vector<1x48x100xf32> to vector<48x100xf32>
    %cst = arith.constant dense<0.000000e+00> : vector<8x100xf32>
    %3 = tpu.matmul %0, %2, %cst {dimension_numbers = #tpu.dot_dimension_numbers<[1], [0], [0], [1], [0, 0, 1, 1], [], []>} : vector<8x48xf32>, vector<48x100xf32>, vector<8x100xf32> -> vector<8x100xf32>
    %c1 = arith.constant 1 : index
    %c0_4 = arith.constant 0 : index
    %c0_5 = arith.constant 0 : index
    %4 = vector.load %arg2[%c1, %c0_4, %c0_5] : memref<5x48x100xf32, #tpu.memory_space<vmem>>, vector<1x48x100xf32>
    %5 = vector.shape_cast %4 : vector<1x48x100xf32> to vector<48x100xf32>
    %cst_6 = arith.constant dense<0.000000e+00> : vector<8x100xf32>
    %6 = tpu.matmul %0, %5, %cst_6 {dimension_numbers = #tpu.dot_dimension_numbers<[1], [0], [0], [1], [0, 0, 1, 1], [], []>} : vector<8x48xf32>, vector<48x100xf32>, vector<8x100xf32> -> vector<8x100xf32>
    %7 = arith.maximumf %3, %6 : vector<8x100xf32>
    %c2 = arith.constant 2 : index
    %c0_7 = arith.constant 0 : index
    %c0_8 = arith.constant 0 : index
    %8 = vector.load %arg2[%c2, %c0_7, %c0_8] : memref<5x48x100xf32, #tpu.memory_space<vmem>>, vector<1x48x100xf32>
    %9 = vector.shape_cast %8 : vector<1x48x100xf32> to vector<48x100xf32>
    %cst_9 = arith.constant dense<0.000000e+00> : vector<8x100xf32>
    %10 = tpu.matmul %0, %9, %cst_9 {dimension_numbers = #tpu.dot_dimension_numbers<[1], [0], [0], [1], [0, 0, 1, 1], [], []>} : vector<8x48xf32>, vector<48x100xf32>, vector<8x100xf32> -> vector<8x100xf32>
    %11 = arith.maximumf %7, %10 : vector<8x100xf32>
    %c3 = arith.constant 3 : index
    %c0_10 = arith.constant 0 : index
    %c0_11 = arith.constant 0 : index
    %12 = vector.load %arg2[%c3, %c0_10, %c0_11] : memref<5x48x100xf32, #tpu.memory_space<vmem>>, vector<1x48x100xf32>
    %13 = vector.shape_cast %12 : vector<1x48x100xf32> to vector<48x100xf32>
    %cst_12 = arith.constant dense<0.000000e+00> : vector<8x100xf32>
    %14 = tpu.matmul %0, %13, %cst_12 {dimension_numbers = #tpu.dot_dimension_numbers<[1], [0], [0], [1], [0, 0, 1, 1], [], []>} : vector<8x48xf32>, vector<48x100xf32>, vector<8x100xf32> -> vector<8x100xf32>
    %15 = arith.maximumf %11, %14 : vector<8x100xf32>
    %c4 = arith.constant 4 : index
    %c0_13 = arith.constant 0 : index
    %c0_14 = arith.constant 0 : index
    %16 = vector.load %arg2[%c4, %c0_13, %c0_14] : memref<5x48x100xf32, #tpu.memory_space<vmem>>, vector<1x48x100xf32>
    %17 = vector.shape_cast %16 : vector<1x48x100xf32> to vector<48x100xf32>
    %cst_15 = arith.constant dense<0.000000e+00> : vector<8x100xf32>
    %18 = tpu.matmul %0, %17, %cst_15 {dimension_numbers = #tpu.dot_dimension_numbers<[1], [0], [0], [1], [0, 0, 1, 1], [], []>} : vector<8x48xf32>, vector<48x100xf32>, vector<8x100xf32> -> vector<8x100xf32>
    %19 = arith.maximumf %15, %18 : vector<8x100xf32>
    %c0_16 = arith.constant 0 : index
    %c0_17 = arith.constant 0 : index
    %20 = vector.load %arg3[%c0_16, %c0_17] : memref<1x100xf32, #tpu.memory_space<vmem>>, vector<1x100xf32>
    %21 = vector.broadcast %20 : vector<1x100xf32> to vector<8x100xf32>
    %22 = arith.addf %19, %21 : vector<8x100xf32>
    %cst_18 = arith.constant 0.000000e+00 : f32
    %23 = vector.broadcast %cst_18 : f32 to vector<8x100xf32>
    %24 = arith.maximumf %22, %23 : vector<8x100xf32>
    %c0_19 = arith.constant 0 : index
    %c0_20 = arith.constant 0 : index
    %25 = vector.load %arg4[%c0_19, %c0_20] : memref<100x100xf32, #tpu.memory_space<vmem>>, vector<100x100xf32>
    %cst_21 = arith.constant dense<0.000000e+00> : vector<8x100xf32>
    %26 = tpu.matmul %24, %25, %cst_21 {dimension_numbers = #tpu.dot_dimension_numbers<[1], [0], [0], [1], [0, 0, 1, 1], [], []>} : vector<8x100xf32>, vector<100x100xf32>, vector<8x100xf32> -> vector<8x100xf32>
    %c0_22 = arith.constant 0 : index
    %c0_23 = arith.constant 0 : index
    %27 = vector.load %arg5[%c0_22, %c0_23] : memref<1x100xf32, #tpu.memory_space<vmem>>, vector<1x100xf32>
    %28 = vector.broadcast %27 : vector<1x100xf32> to vector<8x100xf32>
    %29 = arith.addf %26, %28 : vector<8x100xf32>
    %cst_24 = arith.constant 0.000000e+00 : f32
    %30 = vector.broadcast %cst_24 : f32 to vector<8x100xf32>
    %31 = arith.maximumf %29, %30 : vector<8x100xf32>
    %c0_25 = arith.constant 0 : index
    %c0_26 = arith.constant 0 : index
    %32 = vector.load %arg6[%c0_25, %c0_26] : memref<100x10xf32, #tpu.memory_space<vmem>>, vector<100x10xf32>
    %cst_27 = arith.constant dense<0.000000e+00> : vector<8x10xf32>
    %33 = tpu.matmul %31, %32, %cst_27 {dimension_numbers = #tpu.dot_dimension_numbers<[1], [0], [0], [1], [0, 0, 1, 1], [], []>} : vector<8x100xf32>, vector<100x10xf32>, vector<8x10xf32> -> vector<8x10xf32>
    %c0_28 = arith.constant 0 : index
    %c0_29 = arith.constant 0 : index
    %34 = vector.load %arg7[%c0_28, %c0_29] : memref<1x10xf32, #tpu.memory_space<vmem>>, vector<1x10xf32>
    %35 = vector.broadcast %34 : vector<1x10xf32> to vector<8x10xf32>
    %36 = arith.addf %33, %35 : vector<8x10xf32>
    %c0_30 = arith.constant 0 : index
    %c0_31 = arith.constant 0 : index
    %37 = vector.load %arg8[%c0_30, %c0_31] : memref<8x10xf32, #tpu.memory_space<vmem>>, vector<8x10xf32>
    tpu.vector_store %arg8[%c0_30, %c0_31], %36 {strides = array<i32>} : memref<8x10xf32, #tpu.memory_space<vmem>>, vector<8x10xf32>,
    return
  }
  func.func @transform_0(%arg0: i32) -> (i32, i32) {
    %c0_i32 = arith.constant 0 : i32
    %c0_i32_0 = arith.constant 0 : i32
    return %arg0, %c0_i32 : i32, i32
  }
  func.func @transform_1(%arg0: i32) -> (i32, i32, i32) {
    %c0_i32 = arith.constant 0 : i32
    %c0_i32_0 = arith.constant 0 : i32
    %c0_i32_1 = arith.constant 0 : i32
    %c0_i32_2 = arith.constant 0 : i32
    return %c0_i32, %c0_i32_0, %c0_i32_1 : i32, i32, i32
  }
  func.func @transform_2(%arg0: i32) -> (i32, i32) {
    %c0_i32 = arith.constant 0 : i32
    %c0_i32_0 = arith.constant 0 : i32
    %c0_i32_1 = arith.constant 0 : i32
    return %c0_i32, %c0_i32_0 : i32, i32
  }
  func.func @transform_3(%arg0: i32) -> (i32, i32) {
    %c0_i32 = arith.constant 0 : i32
    %c0_i32_0 = arith.constant 0 : i32
    %c0_i32_1 = arith.constant 0 : i32
    return %c0_i32, %c0_i32_0 : i32, i32
  }
  func.func @transform_4(%arg0: i32) -> (i32, i32) {
    %c0_i32 = arith.constant 0 : i32
    %c0_i32_0 = arith.constant 0 : i32
    %c0_i32_1 = arith.constant 0 : i32
    return %c0_i32, %c0_i32_0 : i32, i32
  }
  func.func @transform_5(%arg0: i32) -> (i32, i32) {
    %c0_i32 = arith.constant 0 : i32
    %c0_i32_0 = arith.constant 0 : i32
    %c0_i32_1 = arith.constant 0 : i32
    return %c0_i32, %c0_i32_0 : i32, i32
  }
  func.func @transform_6(%arg0: i32) -> (i32, i32) {
    %c0_i32 = arith.constant 0 : i32
    %c0_i32_0 = arith.constant 0 : i32
    %c0_i32_1 = arith.constant 0 : i32
    return %c0_i32, %c0_i32_0 : i32, i32
  }
  func.func @transform_7(%arg0: i32) -> (i32, i32) {
    %c0_i32 = arith.constant 0 : i32
    %c0_i32_0 = arith.constant 0 : i32
    return %arg0, %c0_i32 : i32, i32
  }
}

</mosaic_0001>

<llo_original>
// kernel: tpu_custom_call.1
$region0: #{tpu_custom_call.1}
  #allocation0 [shape = 'u32[]', space=smem, size = 0x4, offset = 0x4, fixed_abs, tag = 'smem constant byte address 0x4 - core index']
  #allocation1 [shape = 'u32[144,128]{1,0:T(1,128)}', space=vmem, size = 0x12000, scoped, tag = 'internal scratch']
  %s0 = inlined_call_operand.vmem [shape: f32[8,48], index: 0, kind: input, shape index: {}]
  %s1 = inlined_call_operand.hbm [shape: f32[5,48,100], index: 1, kind: input, shape index: {}]
  %s2 = inlined_call_operand.vmem [shape: f32[1,100], index: 2, kind: input, shape index: {}]
  %s3 = inlined_call_operand.vmem [shape: f32[100,100], index: 3, kind: input, shape index: {}]
  %s4 = inlined_call_operand.vmem [shape: f32[1,100], index: 4, kind: input, shape index: {}]
  %s5 = inlined_call_operand.vmem [shape: f32[100,10], index: 5, kind: input, shape index: {}]
  %s6 = inlined_call_operand.vmem [shape: f32[1,10], index: 6, kind: input, shape index: {}]
  %s7 = inlined_call_operand.hbm [shape: f32[8,10], index: 7, kind: output, shape index: {}]
  %s8 = sld [smem:[#allocation0]]
  $region42: #{tpu_custom_call.1} parent=0
    _
  %s10 = ssub.s32 1, %s8
  %s11 = scalar_select 0, %s10, %s8
  $region1: #{tpu_custom_call.1} parent=0
    #allocation2 [shape = 'u8[122880]{0}', space=vmem, size = 0x1e000, scoped, tag = 'input window, operand 1, single buffered']
    #allocation3 [shape = 's32[1]{0}', space=sflag, size = 0x4, scoped, tag = 'scoped memory for tpu_custom_call.1']
    #allocation4 [shape = 's32[1]{0}', space=sflag, size = 0x4, scoped, tag = 'scoped memory for tpu_custom_call.1']
    #allocation5 [shape = 'u8[4096]{0}', space=vmem, size = 0x1000, scoped, tag = 'output window, operand 0, single buffered']
    %12 = vsyncpa [#allocation3], 0
    %13 = vsyncpa [#allocation4], 0
    // Predicated region
    $region2: #{tpu_custom_call.1} parent=1 // pred_check
      _
    $region3: #{tpu_custom_call.1} parent=1 // pred_check_branch
      %15 = sbr.rel (0) target = $region5
    $region4: #{tpu_custom_call.1} parent=1 // pred_region
      _
    $region5: #{tpu_custom_call.1} parent=1 // pred_fallthru
      _
    // Predicated region
    $region6: #{tpu_custom_call.1} parent=1 // pred_check
      _
    $region7: #{tpu_custom_call.1} parent=1 // pred_check_branch
      %17 = sbr.rel (0) target = $region9
    $region8: #{tpu_custom_call.1} parent=1 // pred_region
      %s19 = ssub.s32 3840, 3840
      %20 = vsyncadd [#allocation3], %s19
      %s21 = sshll.u32 [#allocation2], 4
      %s22 = int_to_ptr.vmem [resolvable:$true] %s21
      %27 = dma.hbm_to_vmem [thread:$0]  %s1, 3840, %s22, [#allocation3], 128, 128, 8
    $region9: #{tpu_custom_call.1} parent=1 // pred_fallthru
      _
    // Predicated region
    $region10: #{tpu_custom_call.1} parent=1 // pred_check
      _
    $region11: #{tpu_custom_call.1} parent=1 // pred_check_branch
      %29 = sbr.rel (0) target = $region13
    $region12: #{tpu_custom_call.1} parent=1 // pred_region
      _
    $region13: #{tpu_custom_call.1} parent=1 // pred_fallthru
      _
    // Predicated region
    $region14: #{tpu_custom_call.1} parent=1 // pred_check
      _
    $region15: #{tpu_custom_call.1} parent=1 // pred_check_branch
      %31 = sbr.rel (0) target = $region17
    $region16: #{tpu_custom_call.1} parent=1 // pred_region
      _
    $region17: #{tpu_custom_call.1} parent=1 // pred_fallthru
      _
    // Predicated region
    $region18: #{tpu_custom_call.1} parent=1 // pred_check
      _
    $region19: #{tpu_custom_call.1} parent=1 // pred_check_branch
      %33 = sbr.rel (0) target = $region21
    $region20: #{tpu_custom_call.1} parent=1 // pred_region
      _
    $region21: #{tpu_custom_call.1} parent=1 // pred_fallthru
      _
    // Predicated region
    $region22: #{tpu_custom_call.1} parent=1 // pred_check
      _
    $region23: #{tpu_custom_call.1} parent=1 // pred_check_branch
      %35 = sbr.rel (0) target = $region25
    $region24: #{tpu_custom_call.1} parent=1 // pred_region
      _
    $region25: #{tpu_custom_call.1} parent=1 // pred_fallthru
      _
    // Predicated region
    $region26: #{tpu_custom_call.1} parent=1 // pred_check
      _
    $region27: #{tpu_custom_call.1} parent=1 // pred_check_branch
      %37 = sbr.rel (0) target = $region29
    $region28: #{tpu_custom_call.1} parent=1 // pred_region
      _
    $region29: #{tpu_custom_call.1} parent=1 // pred_fallthru
      _
    // Predicated region
    $region30: #{tpu_custom_call.1} parent=1 // pred_check
      _
    $region31: #{tpu_custom_call.1} parent=1 // pred_check_branch
      %39 = sbr.rel (0) target = $region33
    $region32: #{tpu_custom_call.1} parent=1 // pred_region
      %40 = dma.done [#allocation3], 3840
    $region33: #{tpu_custom_call.1} parent=1 // pred_fallthru
      _
    %v41 = vld [vmem:[%s0] sm:$0xff]
    %v42 = vld [vmem:[#allocation2] sm:$0xff]
    %v43 = vld [vmem:[#allocation2 + $0x8] sm:$0xff]
    %v44 = vld [vmem:[#allocation2 + $0x10] sm:$0xff]
    %v45 = vld [vmem:[#allocation2 + $0x18] sm:$0xff]
    %v46 = vld [vmem:[#allocation2 + $0x20] sm:$0xff]
    %v47 = vld [vmem:[#allocation2 + $0x28] sm:$0xff]
    %vm48 = vcmask 392192
    %v50 = vsel %vm48, %v41, 0
    %52 = vmatprep.subr.mxu0 0.0
    %53 = vmatpush1.msra.mxu0 0.0
    %54 = vmatprep.subr.mxu0 0.0
    %55 = vmatpush1.msra.mxu0 0.0
    %56 = vmatprep.subr.mxu0 0.0
    %57 = vmatpush1.msra.mxu0 0.0
    %58 = vmatprep.subr.mxu0 0.0
    %59 = vmatpush1.msra.mxu0 0.0
    %60 = vmatprep.subr.mxu0 0.0
    %61 = vmatpush1.msra.mxu0 0.0
    %62 = vmatprep.subr.mxu0 0.0
    %63 = vmatpush1.msra.mxu0 0.0
    %64 = vmatprep.subr.mxu0 0.0
    %65 = vmatpush1.msra.mxu0 0.0
    %66 = vmatprep.subr.mxu0 0.0
    %67 = vmatpush1.msra.mxu0 0.0
    %68 = vmatprep.subr.mxu0 0.0
    %69 = vmatpush1.msra.mxu0 0.0
    %70 = vmatprep.subr.mxu0 0.0
    %71 = vmatpush1.msra.mxu0 0.0
    %72 = vmatprep.subr.mxu0 0.0
    %73 = vmatpush1.msra.mxu0 %v47
    %74 = vmatprep.subr.mxu0 0.0
    %75 = vmatpush1.msra.mxu0 %v46
    %76 = vmatprep.subr.mxu0 0.0
    %77 = vmatpush1.msra.mxu0 %v45
    %78 = vmatprep.subr.mxu0 0.0
    %79 = vmatpush1.msra.mxu0 %v44
    %80 = vmatprep.subr.mxu0 0.0
    %81 = vmatpush1.msra.mxu0 %v43
    %82 = vmatprep.subr.mxu0 0.0
    %83 = vmatpush1.msra.mxu0 %v42
    %84 = vmatprep.subr.mxu0 0.0
    %85 = vmatpush2.msra.mxu0 0.0
    %86 = vmatprep.subr.mxu0 0.0
    %87 = vmatpush2.msra.mxu0 0.0
    %88 = vmatprep.subr.mxu0 0.0
    %89 = vmatpush2.msra.mxu0 0.0
    %90 = vmatprep.subr.mxu0 0.0
    %91 = vmatpush2.msra.mxu0 0.0
    %92 = vmatprep.subr.mxu0 0.0
    %93 = vmatpush2.msra.mxu0 0.0
    %94 = vmatprep.subr.mxu0 0.0
    %95 = vmatpush2.msra.mxu0 0.0
    %96 = vmatprep.subr.mxu0 0.0
    %97 = vmatpush2.msra.mxu0 0.0
    %98 = vmatprep.subr.mxu0 0.0
    %99 = vmatpush2.msra.mxu0 0.0
    %100 = vmatprep.subr.mxu0 0.0
    %101 = vmatpush2.msra.mxu0 0.0
    %102 = vmatprep.subr.mxu0 0.0
    %103 = vmatpush2.msra.mxu0 0.0
    %104 = vmatprep.subr.mxu0 0.0
    %105 = vmatpush2.msra.mxu0 0.0
    %106 = vmatprep.subr.mxu0 0.0
    %107 = vmatpush2.msra.mxu0 0.0
    %108 = vmatprep.subr.mxu0 0.0
    %109 = vmatpush2.msra.mxu0 0.0
    %110 = vmatprep.subr.mxu0 0.0
    %111 = vmatpush2.msra.mxu0 0.0
    %112 = vmatprep.subr.mxu0 0.0
    %113 = vmatpush2.msra.mxu0 0.0
    %114 = vmatprep.subr.mxu0 0.0
    %115 = vmatpush2.msra.mxu0 0.0
    %116 = vmatprep.mubr.f32.mxu0 0.0
    %117 = vmatmul.mubr.f32.gmra.mxu0 %v50
    %v118 = vpop.f32.mrf.mxu0
    %v119 = vadd.f32 0.0, %v118
    %v120 = vpop.f32.mrf.mxu0
    %121 = vdwg.mxu0
    %s122 = scalar_lea.vmem [#allocation2], 48
    %v123 = vld [vmem:[%s122] sm:$0xff]
    %v124 = vld [vmem:[%s122 + $0x8] sm:$0xff]
    %v125 = vld [vmem:[%s122 + $0x10] sm:$0xff]
    %v126 = vld [vmem:[%s122 + $0x18] sm:$0xff]
    %v127 = vld [vmem:[%s122 + $0x20] sm:$0xff]
    %v128 = vld [vmem:[%s122 + $0x28] sm:$0xff]
    %129 = vmatprep.subr.mxu0 0.0
    %130 = vmatpush1.msra.mxu0 0.0
    %131 = vmatprep.subr.mxu0 0.0
    %132 = vmatpush1.msra.mxu0 0.0
    %133 = vmatprep.subr.mxu0 0.0
    %134 = vmatpush1.msra.mxu0 0.0
    %135 = vmatprep.subr.mxu0 0.0
    %136 = vmatpush1.msra.mxu0 0.0
    %137 = vmatprep.subr.mxu0 0.0
    %138 = vmatpush1.msra.mxu0 0.0
    %139 = vmatprep.subr.mxu0 0.0
    %140 = vmatpush1.msra.mxu0 0.0
    %141 = vmatprep.subr.mxu0 0.0
    %142 = vmatpush1.msra.mxu0 0.0
    %143 = vmatprep.subr.mxu0 0.0
    %144 = vmatpush1.msra.mxu0 0.0
    %145 = vmatprep.subr.mxu0 0.0
    %146 = vmatpush1.msra.mxu0 0.0
    %147 = vmatprep.subr.mxu0 0.0
    %148 = vmatpush1.msra.mxu0 0.0
    %149 = vmatprep.subr.mxu0 0.0
    %150 = vmatpush1.msra.mxu0 %v128
    %151 = vmatprep.subr.mxu0 0.0
    %152 = vmatpush1.msra.mxu0 %v127
    %153 = vmatprep.subr.mxu0 0.0
    %154 = vmatpush1.msra.mxu0 %v126
    %155 = vmatprep.subr.mxu0 0.0
    %156 = vmatpush1.msra.mxu0 %v125
    %157 = vmatprep.subr.mxu0 0.0
    %158 = vmatpush1.msra.mxu0 %v124
    %159 = vmatprep.subr.mxu0 0.0
    %160 = vmatpush1.msra.mxu0 %v123
    %161 = vmatprep.subr.mxu0 0.0
    %162 = vmatpush2.msra.mxu0 0.0
    %163 = vmatprep.subr.mxu0 0.0
    %164 = vmatpush2.msra.mxu0 0.0
    %165 = vmatprep.subr.mxu0 0.0
    %166 = vmatpush2.msra.mxu0 0.0
    %167 = vmatprep.subr.mxu0 0.0
    %168 = vmatpush2.msra.mxu0 0.0
    %169 = vmatprep.subr.mxu0 0.0
    %170 = vmatpush2.msra.mxu0 0.0
    %171 = vmatprep.subr.mxu0 0.0
    %172 = vmatpush2.msra.mxu0 0.0
    %173 = vmatprep.subr.mxu0 0.0
    %174 = vmatpush2.msra.mxu0 0.0
    %175 = vmatprep.subr.mxu0 0.0
    %176 = vmatpush2.msra.mxu0 0.0
    %177 = vmatprep.subr.mxu0 0.0
    %178 = vmatpush2.msra.mxu0 0.0
    %179 = vmatprep.subr.mxu0 0.0
    %180 = vmatpush2.msra.mxu0 0.0
    %181 = vmatprep.subr.mxu0 0.0
    %182 = vmatpush2.msra.mxu0 0.0
    %183 = vmatprep.subr.mxu0 0.0
    %184 = vmatpush2.msra.mxu0 0.0
    %185 = vmatprep.subr.mxu0 0.0
    %186 = vmatpush2.msra.mxu0 0.0
    %187 = vmatprep.subr.mxu0 0.0
    %188 = vmatpush2.msra.mxu0 0.0
    %189 = vmatprep.subr.mxu0 0.0
    %190 = vmatpush2.msra.mxu0 0.0
    %191 = vmatprep.subr.mxu0 0.0
    %192 = vmatpush2.msra.mxu0 0.0
    %193 = vmatprep.mubr.f32.mxu0 0.0
    %194 = vmatmul.mubr.f32.gmra.mxu0 %v50
    %v195 = vpop.f32.mrf.mxu0
    %v196 = vadd.f32 0.0, %v195
    %v197 = vpop.f32.mrf.mxu0
    %198 = vdwg.mxu0
    %v199 = vmax.f32 %v119, %v196
    %s200 = scalar_lea.vmem [#allocation2], 96
    %v201 = vld [vmem:[%s200] sm:$0xff]
    %v202 = vld [vmem:[%s200 + $0x8] sm:$0xff]
    %v203 = vld [vmem:[%s200 + $0x10] sm:$0xff]
    %v204 = vld [vmem:[%s200 + $0x18] sm:$0xff]
    %v205 = vld [vmem:[%s200 + $0x20] sm:$0xff]
    %v206 = vld [vmem:[%s200 + $0x28] sm:$0xff]
    %207 = vmatprep.subr.mxu0 0.0
    %208 = vmatpush1.msra.mxu0 0.0
    %209 = vmatprep.subr.mxu0 0.0
    %210 = vmatpush1.msra.mxu0 0.0
    %211 = vmatprep.subr.mxu0 0.0
    %212 = vmatpush1.msra.mxu0 0.0
    %213 = vmatprep.subr.mxu0 0.0
    %214 = vmatpush1.msra.mxu0 0.0
    %215 = vmatprep.subr.mxu0 0.0
    %216 = vmatpush1.msra.mxu0 0.0
    %217 = vmatprep.subr.mxu0 0.0
    %218 = vmatpush1.msra.mxu0 0.0
    %219 = vmatprep.subr.mxu0 0.0
    %220 = vmatpush1.msra.mxu0 0.0
    %221 = vmatprep.subr.mxu0 0.0
    %222 = vmatpush1.msra.mxu0 0.0
    %223 = vmatprep.subr.mxu0 0.0
    %224 = vmatpush1.msra.mxu0 0.0
    %225 = vmatprep.subr.mxu0 0.0
    %226 = vmatpush1.msra.mxu0 0.0
    %227 = vmatprep.subr.mxu0 0.0
    %228 = vmatpush1.msra.mxu0 %v206
    %229 = vmatprep.subr.mxu0 0.0
    %230 = vmatpush1.msra.mxu0 %v205
    %231 = vmatprep.subr.mxu0 0.0
    %232 = vmatpush1.msra.mxu0 %v204
    %233 = vmatprep.subr.mxu0 0.0
    %234 = vmatpush1.msra.mxu0 %v203
    %235 = vmatprep.subr.mxu0 0.0
    %236 = vmatpush1.msra.mxu0 %v202
    %237 = vmatprep.subr.mxu0 0.0
    %238 = vmatpush1.msra.mxu0 %v201
    %239 = vmatprep.subr.mxu0 0.0
    %240 = vmatpush2.msra.mxu0 0.0
    %241 = vmatprep.subr.mxu0 0.0
    %242 = vmatpush2.msra.mxu0 0.0
    %243 = vmatprep.subr.mxu0 0.0
    %244 = vmatpush2.msra.mxu0 0.0
    %245 = vmatprep.subr.mxu0 0.0
    %246 = vmatpush2.msra.mxu0 0.0
    %247 = vmatprep.subr.mxu0 0.0
    %248 = vmatpush2.msra.mxu0 0.0
    %249 = vmatprep.subr.mxu0 0.0
    %250 = vmatpush2.msra.mxu0 0.0
    %251 = vmatprep.subr.mxu0 0.0
    %252 = vmatpush2.msra.mxu0 0.0
    %253 = vmatprep.subr.mxu0 0.0
    %254 = vmatpush2.msra.mxu0 0.0
    %255 = vmatprep.subr.mxu0 0.0
    %256 = vmatpush2.msra.mxu0 0.0
    %257 = vmatprep.subr.mxu0 0.0
    %258 = vmatpush2.msra.mxu0 0.0
    %259 = vmatprep.subr.mxu0 0.0
    %260 = vmatpush2.msra.mxu0 0.0
    %261 = vmatprep.subr.mxu0 0.0
    %262 = vmatpush2.msra.mxu0 0.0
    %263 = vmatprep.subr.mxu0 0.0
    %264 = vmatpush2.msra.mxu0 0.0
    %265 = vmatprep.subr.mxu0 0.0
    %266 = vmatpush2.msra.mxu0 0.0
    %267 = vmatprep.subr.mxu0 0.0
    %268 = vmatpush2.msra.mxu0 0.0
    %269 = vmatprep.subr.mxu0 0.0
    %270 = vmatpush2.msra.mxu0 0.0
    %271 = vmatprep.mubr.f32.mxu0 0.0
    %272 = vmatmul.mubr.f32.gmra.mxu0 %v50
    %v273 = vpop.f32.mrf.mxu0
    %v274 = vadd.f32 0.0, %v273
    %v275 = vpop.f32.mrf.mxu0
    %276 = vdwg.mxu0
    %v277 = vmax.f32 %v199, %v274
    %s278 = scalar_lea.vmem [#allocation2], 144
    %v279 = vld [vmem:[%s278] sm:$0xff]
    %v280 = vld [vmem:[%s278 + $0x8] sm:$0xff]
    %v281 = vld [vmem:[%s278 + $0x10] sm:$0xff]
    %v282 = vld [vmem:[%s278 + $0x18] sm:$0xff]
    %v283 = vld [vmem:[%s278 + $0x20] sm:$0xff]
    %v284 = vld [vmem:[%s278 + $0x28] sm:$0xff]
    %285 = vmatprep.subr.mxu0 0.0
    %286 = vmatpush1.msra.mxu0 0.0
    %287 = vmatprep.subr.mxu0 0.0
    %288 = vmatpush1.msra.mxu0 0.0
    %289 = vmatprep.subr.mxu0 0.0
    %290 = vmatpush1.msra.mxu0 0.0
    %291 = vmatprep.subr.mxu0 0.0
    %292 = vmatpush1.msra.mxu0 0.0
    %293 = vmatprep.subr.mxu0 0.0
    %294 = vmatpush1.msra.mxu0 0.0
    %295 = vmatprep.subr.mxu0 0.0
    %296 = vmatpush1.msra.mxu0 0.0
    %297 = vmatprep.subr.mxu0 0.0
    %298 = vmatpush1.msra.mxu0 0.0
    %299 = vmatprep.subr.mxu0 0.0
    %300 = vmatpush1.msra.mxu0 0.0
    %301 = vmatprep.subr.mxu0 0.0
    %302 = vmatpush1.msra.mxu0 0.0
    %303 = vmatprep.subr.mxu0 0.0
    %304 = vmatpush1.msra.mxu0 0.0
    %305 = vmatprep.subr.mxu0 0.0
    %306 = vmatpush1.msra.mxu0 %v284
    %307 = vmatprep.subr.mxu0 0.0
    %308 = vmatpush1.msra.mxu0 %v283
    %309 = vmatprep.subr.mxu0 0.0
    %310 = vmatpush1.msra.mxu0 %v282
    %311 = vmatprep.subr.mxu0 0.0
    %312 = vmatpush1.msra.mxu0 %v281
    %313 = vmatprep.subr.mxu0 0.0
    %314 = vmatpush1.msra.mxu0 %v280
    %315 = vmatprep.subr.mxu0 0.0
    %316 = vmatpush1.msra.mxu0 %v279
    %317 = vmatprep.subr.mxu0 0.0
    %318 = vmatpush2.msra.mxu0 0.0
    %319 = vmatprep.subr.mxu0 0.0
    %320 = vmatpush2.msra.mxu0 0.0
    %321 = vmatprep.subr.mxu0 0.0
    %322 = vmatpush2.msra.mxu0 0.0
    %323 = vmatprep.subr.mxu0 0.0
    %324 = vmatpush2.msra.mxu0 0.0
    %325 = vmatprep.subr.mxu0 0.0
    %326 = vmatpush2.msra.mxu0 0.0
    %327 = vmatprep.subr.mxu0 0.0
    %328 = vmatpush2.msra.mxu0 0.0
    %329 = vmatprep.subr.mxu0 0.0
    %330 = vmatpush2.msra.mxu0 0.0
    %331 = vmatprep.subr.mxu0 0.0
    %332 = vmatpush2.msra.mxu0 0.0
    %333 = vmatprep.subr.mxu0 0.0
    %334 = vmatpush2.msra.mxu0 0.0
    %335 = vmatprep.subr.mxu0 0.0
    %336 = vmatpush2.msra.mxu0 0.0
    %337 = vmatprep.subr.mxu0 0.0
    %338 = vmatpush2.msra.mxu0 0.0
    %339 = vmatprep.subr.mxu0 0.0
    %340 = vmatpush2.msra.mxu0 0.0
    %341 = vmatprep.subr.mxu0 0.0
    %342 = vmatpush2.msra.mxu0 0.0
    %343 = vmatprep.subr.mxu0 0.0
    %344 = vmatpush2.msra.mxu0 0.0
    %345 = vmatprep.subr.mxu0 0.0
    %346 = vmatpush2.msra.mxu0 0.0
    %347 = vmatprep.subr.mxu0 0.0
    %348 = vmatpush2.msra.mxu0 0.0
    %349 = vmatprep.mubr.f32.mxu0 0.0
    %350 = vmatmul.mubr.f32.gmra.mxu0 %v50
    %v351 = vpop.f32.mrf.mxu0
    %v352 = vadd.f32 0.0, %v351
    %v353 = vpop.f32.mrf.mxu0
    %354 = vdwg.mxu0
    %v355 = vmax.f32 %v277, %v352
    %s356 = scalar_lea.vmem [#allocation2], 192
    %v357 = vld [vmem:[%s356] sm:$0xff]
    %v358 = vld [vmem:[%s356 + $0x8] sm:$0xff]
    %v359 = vld [vmem:[%s356 + $0x10] sm:$0xff]
    %v360 = vld [vmem:[%s356 + $0x18] sm:$0xff]
    %v361 = vld [vmem:[%s356 + $0x20] sm:$0xff]
    %v362 = vld [vmem:[%s356 + $0x28] sm:$0xff]
    %363 = vmatprep.subr.mxu0 0.0
    %364 = vmatpush1.msra.mxu0 0.0
    %365 = vmatprep.subr.mxu0 0.0
    %366 = vmatpush1.msra.mxu0 0.0
    %367 = vmatprep.subr.mxu0 0.0
    %368 = vmatpush1.msra.mxu0 0.0
    %369 = vmatprep.subr.mxu0 0.0
    %370 = vmatpush1.msra.mxu0 0.0
    %371 = vmatprep.subr.mxu0 0.0
    %372 = vmatpush1.msra.mxu0 0.0
    %373 = vmatprep.subr.mxu0 0.0
    %374 = vmatpush1.msra.mxu0 0.0
    %375 = vmatprep.subr.mxu0 0.0
    %376 = vmatpush1.msra.mxu0 0.0
    %377 = vmatprep.subr.mxu0 0.0
    %378 = vmatpush1.msra.mxu0 0.0
    %379 = vmatprep.subr.mxu0 0.0
    %380 = vmatpush1.msra.mxu0 0.0
    %381 = vmatprep.subr.mxu0 0.0
    %382 = vmatpush1.msra.mxu0 0.0
    %383 = vmatprep.subr.mxu0 0.0
    %384 = vmatpush1.msra.mxu0 %v362
    %385 = vmatprep.subr.mxu0 0.0
    %386 = vmatpush1.msra.mxu0 %v361
    %387 = vmatprep.subr.mxu0 0.0
    %388 = vmatpush1.msra.mxu0 %v360
    %389 = vmatprep.subr.mxu0 0.0
    %390 = vmatpush1.msra.mxu0 %v359
    %391 = vmatprep.subr.mxu0 0.0
    %392 = vmatpush1.msra.mxu0 %v358
    %393 = vmatprep.subr.mxu0 0.0
    %394 = vmatpush1.msra.mxu0 %v357
    %395 = vmatprep.subr.mxu0 0.0
    %396 = vmatpush2.msra.mxu0 0.0
    %397 = vmatprep.subr.mxu0 0.0
    %398 = vmatpush2.msra.mxu0 0.0
    %399 = vmatprep.subr.mxu0 0.0
    %400 = vmatpush2.msra.mxu0 0.0
    %401 = vmatprep.subr.mxu0 0.0
    %402 = vmatpush2.msra.mxu0 0.0
    %403 = vmatprep.subr.mxu0 0.0
    %404 = vmatpush2.msra.mxu0 0.0
    %405 = vmatprep.subr.mxu0 0.0
    %406 = vmatpush2.msra.mxu0 0.0
    %407 = vmatprep.subr.mxu0 0.0
    %408 = vmatpush2.msra.mxu0 0.0
    %409 = vmatprep.subr.mxu0 0.0
    %410 = vmatpush2.msra.mxu0 0.0
    %411 = vmatprep.subr.mxu0 0.0
    %412 = vmatpush2.msra.mxu0 0.0
    %413 = vmatprep.subr.mxu0 0.0
    %414 = vmatpush2.msra.mxu0 0.0
    %415 = vmatprep.subr.mxu0 0.0
    %416 = vmatpush2.msra.mxu0 0.0
    %417 = vmatprep.subr.mxu0 0.0
    %418 = vmatpush2.msra.mxu0 0.0
    %419 = vmatprep.subr.mxu0 0.0
    %420 = vmatpush2.msra.mxu0 0.0
    %421 = vmatprep.subr.mxu0 0.0
    %422 = vmatpush2.msra.mxu0 0.0
    %423 = vmatprep.subr.mxu0 0.0
    %424 = vmatpush2.msra.mxu0 0.0
    %425 = vmatprep.subr.mxu0 0.0
    %426 = vmatpush2.msra.mxu0 0.0
    %427 = vmatprep.mubr.f32.mxu0 0.0
    %428 = vmatmul.mubr.f32.gmra.mxu0 %v50
    %v429 = vpop.f32.mrf.mxu0
    %v430 = vadd.f32 0.0, %v429
    %v431 = vpop.f32.mrf.mxu0
    %432 = vdwg.mxu0
    %v433 = vmax.f32 %v355, %v430
    %v434 = vld [vmem:[%s2] sm:$0x1]
    %v436 = vlaneseq
    %v437 = vshrl.u32 %v436, 7
    %v438 = vsub.s32 0, %v437
    %v439 = vrot.slane %v434, %v438
    %v441 = vadd.f32 %v433, %v439
    %v442 = vmax.f32 %v441, 0.0
    %v443 = vld [vmem:[%s3] sm:$0xff]
    %v444 = vld [vmem:[%s3 + $0x8] sm:$0xff]
    %v445 = vld [vmem:[%s3 + $0x10] sm:$0xff]
    %v446 = vld [vmem:[%s3 + $0x18] sm:$0xff]
    %v447 = vld [vmem:[%s3 + $0x20] sm:$0xff]
    %v448 = vld [vmem:[%s3 + $0x28] sm:$0xff]
    %v449 = vld [vmem:[%s3 + $0x30] sm:$0xff]
    %v450 = vld [vmem:[%s3 + $0x38] sm:$0xff]
    %v451 = vld [vmem:[%s3 + $0x40] sm:$0xff]
    %v452 = vld [vmem:[%s3 + $0x48] sm:$0xff]
    %v453 = vld [vmem:[%s3 + $0x50] sm:$0xff]
    %v454 = vld [vmem:[%s3 + $0x58] sm:$0xff]
    %v455 = vld [vmem:[%s3 + $0x60] sm:$0xf]
    %v456 = vld [vmem:[%s4] sm:$0x1]
    %v458 = vlaneseq
    %v459 = vshrl.u32 %v458, 7
    %v460 = vsub.s32 0, %v459
    %v461 = vrot.slane %v456, %v460
    %vm463 = vcmask 818176
    %v465 = vsel %vm463, %v442, 0
    %vm467 = vcmask 1043456
    %v469 = vsel %vm467, %v455, 0
    %471 = vmatprep.subr.mxu0 0.0
    %472 = vmatpush1.msra.mxu0 0.0
    %473 = vmatprep.subr.mxu0 0.0
    %474 = vmatpush1.msra.mxu0 0.0
    %475 = vmatprep.subr.mxu0 0.0
    %476 = vmatpush1.msra.mxu0 0.0
    %477 = vmatprep.subr.mxu0 0.0
    %478 = vmatpush1.msra.mxu0 %v469
    %479 = vmatprep.subr.mxu0 0.0
    %480 = vmatpush1.msra.mxu0 %v454
    %481 = vmatprep.subr.mxu0 0.0
    %482 = vmatpush1.msra.mxu0 %v453
    %483 = vmatprep.subr.mxu0 0.0
    %484 = vmatpush1.msra.mxu0 %v452
    %485 = vmatprep.subr.mxu0 0.0
    %486 = vmatpush1.msra.mxu0 %v451
    %487 = vmatprep.subr.mxu0 0.0
    %488 = vmatpush1.msra.mxu0 %v450
    %489 = vmatprep.subr.mxu0 0.0
    %490 = vmatpush1.msra.mxu0 %v449
    %491 = vmatprep.subr.mxu0 0.0
    %492 = vmatpush1.msra.mxu0 %v448
    %493 = vmatprep.subr.mxu0 0.0
    %494 = vmatpush1.msra.mxu0 %v447
    %495 = vmatprep.subr.mxu0 0.0
    %496 = vmatpush1.msra.mxu0 %v446
    %497 = vmatprep.subr.mxu0 0.0
    %498 = vmatpush1.msra.mxu0 %v445
    %499 = vmatprep.subr.mxu0 0.0
    %500 = vmatpush1.msra.mxu0 %v444
    %501 = vmatprep.subr.mxu0 0.0
    %502 = vmatpush1.msra.mxu0 %v443
    %503 = vmatprep.subr.mxu0 0.0
    %504 = vmatpush2.msra.mxu0 0.0
    %505 = vmatprep.subr.mxu0 0.0
    %506 = vmatpush2.msra.mxu0 0.0
    %507 = vmatprep.subr.mxu0 0.0
    %508 = vmatpush2.msra.mxu0 0.0
    %509 = vmatprep.subr.mxu0 0.0
    %510 = vmatpush2.msra.mxu0 0.0
    %511 = vmatprep.subr.mxu0 0.0
    %512 = vmatpush2.msra.mxu0 0.0
    %513 = vmatprep.subr.mxu0 0.0
    %514 = vmatpush2.msra.mxu0 0.0
    %515 = vmatprep.subr.mxu0 0.0
    %516 = vmatpush2.msra.mxu0 0.0
    %517 = vmatprep.subr.mxu0 0.0
    %518 = vmatpush2.msra.mxu0 0.0
    %519 = vmatprep.subr.mxu0 0.0
    %520 = vmatpush2.msra.mxu0 0.0
    %521 = vmatprep.subr.mxu0 0.0
    %522 = vmatpush2.msra.mxu0 0.0
    %523 = vmatprep.subr.mxu0 0.0
    %524 = vmatpush2.msra.mxu0 0.0
    %525 = vmatprep.subr.mxu0 0.0
    %526 = vmatpush2.msra.mxu0 0.0
    %527 = vmatprep.subr.mxu0 0.0
    %528 = vmatpush2.msra.mxu0 0.0
    %529 = vmatprep.subr.mxu0 0.0
    %530 = vmatpush2.msra.mxu0 0.0
    %531 = vmatprep.subr.mxu0 0.0
    %532 = vmatpush2.msra.mxu0 0.0
    %533 = vmatprep.subr.mxu0 0.0
    %534 = vmatpush2.msra.mxu0 0.0
    %535 = vmatprep.mubr.f32.mxu0 0.0
    %536 = vmatmul.mubr.f32.gmra.mxu0 %v465
    %v537 = vpop.f32.mrf.mxu0
    %v538 = vadd.f32 %v461, %v537
    %v539 = vpop.f32.mrf.mxu0
    %540 = vdwg.mxu0
    %v541 = vmax.f32 %v538, 0.0
    %v542 = vld [vmem:[%s5] sm:$0xff]
    %v543 = vld [vmem:[%s5 + $0x8] sm:$0xff]
    %v544 = vld [vmem:[%s5 + $0x10] sm:$0xff]
    %v545 = vld [vmem:[%s5 + $0x18] sm:$0xff]
    %v546 = vld [vmem:[%s5 + $0x20] sm:$0xff]
    %v547 = vld [vmem:[%s5 + $0x28] sm:$0xff]
    %v548 = vld [vmem:[%s5 + $0x30] sm:$0xff]
    %v549 = vld [vmem:[%s5 + $0x38] sm:$0xff]
    %v550 = vld [vmem:[%s5 + $0x40] sm:$0xff]
    %v551 = vld [vmem:[%s5 + $0x48] sm:$0xff]
    %v552 = vld [vmem:[%s5 + $0x50] sm:$0xff]
    %v553 = vld [vmem:[%s5 + $0x58] sm:$0xff]
    %v554 = vld [vmem:[%s5 + $0x60] sm:$0xf]
    %v555 = vld [vmem:[%s6] sm:$0x1]
    %v557 = vlaneseq
    %v558 = vshrl.u32 %v557, 7
    %v559 = vsub.s32 0, %v558
    %v560 = vrot.slane %v555, %v559
    %v563 = vsel %vm463, %v541, 0
    %v566 = vsel %vm467, %v554, 0
    %568 = vmatprep.subr.mxu0 0.0
    %569 = vmatpush1.msra.mxu0 0.0
    %570 = vmatprep.subr.mxu0 0.0
    %571 = vmatpush1.msra.mxu0 0.0
    %572 = vmatprep.subr.mxu0 0.0
    %573 = vmatpush1.msra.mxu0 0.0
    %574 = vmatprep.subr.mxu0 0.0
    %575 = vmatpush1.msra.mxu0 %v566
    %576 = vmatprep.subr.mxu0 0.0
    %577 = vmatpush1.msra.mxu0 %v553
    %578 = vmatprep.subr.mxu0 0.0
    %579 = vmatpush1.msra.mxu0 %v552
    %580 = vmatprep.subr.mxu0 0.0
    %581 = vmatpush1.msra.mxu0 %v551
    %582 = vmatprep.subr.mxu0 0.0
    %583 = vmatpush1.msra.mxu0 %v550
    %584 = vmatprep.subr.mxu0 0.0
    %585 = vmatpush1.msra.mxu0 %v549
    %586 = vmatprep.subr.mxu0 0.0
    %587 = vmatpush1.msra.mxu0 %v548
    %588 = vmatprep.subr.mxu0 0.0
    %589 = vmatpush1.msra.mxu0 %v547
    %590 = vmatprep.subr.mxu0 0.0
    %591 = vmatpush1.msra.mxu0 %v546
    %592 = vmatprep.subr.mxu0 0.0
    %593 = vmatpush1.msra.mxu0 %v545
    %594 = vmatprep.subr.mxu0 0.0
    %595 = vmatpush1.msra.mxu0 %v544
    %596 = vmatprep.subr.mxu0 0.0
    %597 = vmatpush1.msra.mxu0 %v543
    %598 = vmatprep.subr.mxu0 0.0
    %599 = vmatpush1.msra.mxu0 %v542
    %600 = vmatprep.subr.mxu0 0.0
    %601 = vmatpush2.msra.mxu0 0.0
    %602 = vmatprep.subr.mxu0 0.0
    %603 = vmatpush2.msra.mxu0 0.0
    %604 = vmatprep.subr.mxu0 0.0
    %605 = vmatpush2.msra.mxu0 0.0
    %606 = vmatprep.subr.mxu0 0.0
    %607 = vmatpush2.msra.mxu0 0.0
    %608 = vmatprep.subr.mxu0 0.0
    %609 = vmatpush2.msra.mxu0 0.0
    %610 = vmatprep.subr.mxu0 0.0
    %611 = vmatpush2.msra.mxu0 0.0
    %612 = vmatprep.subr.mxu0 0.0
    %613 = vmatpush2.msra.mxu0 0.0
    %614 = vmatprep.subr.mxu0 0.0
    %615 = vmatpush2.msra.mxu0 0.0
    %616 = vmatprep.subr.mxu0 0.0
    %617 = vmatpush2.msra.mxu0 0.0
    %618 = vmatprep.subr.mxu0 0.0
    %619 = vmatpush2.msra.mxu0 0.0
    %620 = vmatprep.subr.mxu0 0.0
    %621 = vmatpush2.msra.mxu0 0.0
    %622 = vmatprep.subr.mxu0 0.0
    %623 = vmatpush2.msra.mxu0 0.0
    %624 = vmatprep.subr.mxu0 0.0
    %625 = vmatpush2.msra.mxu0 0.0
    %626 = vmatprep.subr.mxu0 0.0
    %627 = vmatpush2.msra.mxu0 0.0
    %628 = vmatprep.subr.mxu0 0.0
    %629 = vmatpush2.msra.mxu0 0.0
    %630 = vmatprep.subr.mxu0 0.0
    %631 = vmatpush2.msra.mxu0 0.0
    %632 = vmatprep.mubr.f32.mxu0 0.0
    %633 = vmatmul.mubr.f32.gmra.mxu0 %v563
    %v634 = vpop.f32.mrf.mxu0
    %v635 = vadd.f32 %v560, %v634
    %v636 = vpop.f32.mrf.mxu0
    %637 = vdwg.mxu0
    %vm638 = vcmask 80896
    %639 = vst.msk [vmem:[#allocation5] sm:$0xff] %vm638, %v635
    // Predicated region
    $region34: #{tpu_custom_call.1} parent=1 // pred_check
      _
    $region35: #{tpu_custom_call.1} parent=1 // pred_check_branch
      %641 = sbr.rel (0) target = $region37
    $region36: #{tpu_custom_call.1} parent=1 // pred_region
      %s643 = ssub.s32 128, 128
      %644 = vsyncadd [#allocation4], %s643
      %s646 = sshll.u32 [#allocation5], 4
      %s647 = int_to_ptr.vmem [resolvable:$true] %s646
      %649 = dma.vmem_to_hbm [thread:$0]  %s647, 128, %s7, [#allocation4]
    $region37: #{tpu_custom_call.1} parent=1 // pred_fallthru
      _
    // Predicated region
    $region38: #{tpu_custom_call.1} parent=1 // pred_check
      _
    $region39: #{tpu_custom_call.1} parent=1 // pred_check_branch
      %651 = sbr.rel (0) target = $region41
    $region40: #{tpu_custom_call.1} parent=1 // pred_region
      %652 = dma.done [#allocation4], 128
    $region41: #{tpu_custom_call.1} parent=1 // pred_fallthru
      _
    %653 = vsyncpa [#allocation3], 1
    %654 = vsyncpa [#allocation4], 1

</llo_original>
